<compile_context>
chip_gen: v6e
topology: v6e:2x2x1
jax: 0.10.0
libtpu: 0.0.40
codegen_flags: <defaults>
</compile_context>

<pallas_src>
import jax
import jax.numpy as jnp
from jax.experimental import pallas as pl
from jax.experimental.pallas import tpu as pltpu


def _ngram_kernel(ids_ref, wf_ref, b1_ref, w2_ref, b2_ref, out_ref):
    """ids:(TM,C) i32  wf:(C*Vp,H)  b1:(1,H) f32  w2:(H,Vp)  b2:(1,Vp) f32  out:(TM,Vp) f32."""
    ids = ids_ref[...]                                   # (TM, C) int32
    tm, ctx = ids.shape
    kdim, hidden = wf_ref.shape                          # (C*Vp, H)
    vpad = kdim // ctx

    # Combined one-hot over the folded embedding axis: one lane-iota, one compare
    # per context slot OR'd together, one cast.  Lanes c*Vp + ids[:, c] are 1.
    lane = jax.lax.broadcasted_iota(jnp.int32, (tm, kdim), 1)
    mask = lane == ids[:, 0:1]
    for c in range(1, ctx):                              # static, tiny (C=2)
        mask = jnp.logical_or(mask, lane == ids[:, c:c + 1] + c * vpad)
    onehot = mask.astype(wf_ref.dtype)                   # (TM, C*Vp)

    # Fused embedding-gather + linear1: single K=256 MXU matmul, f32 accumulate.
    h = jnp.dot(onehot, wf_ref[...], preferred_element_type=jnp.float32) + b1_ref[...]
    h = jnp.maximum(h, 0.0)                              # ReLU (f32)

    # linear2; padded vocab columns have b2 = -1e30 so softmax ignores them.
    logits = jnp.dot(h.astype(w2_ref.dtype), w2_ref[...],
                     preferred_element_type=jnp.float32) + b2_ref[...]

    # Numerically stable log-softmax over the (padded, lane-dense) vocab dim.
    m = jnp.max(logits, axis=1, keepdims=True)
    shifted = logits - m
    lse = jnp.log(jnp.sum(jnp.exp(shifted), axis=1, keepdims=True))
    out_ref[...] = (shifted - lse).astype(out_ref.dtype)


def _round_up(x, m):
    return (x + m - 1) // m * m


def ngram_forward(inputs, emb, w1, b1, w2, b2, *,
                  tile_m=None, compute_dtype=jnp.bfloat16):
    """NGramLanguageModeler.forward, batched over contexts.

    inputs: (C,) or (B, C) int32 token ids
    emb:    (V, E) f32
    w1:     (C*E, 128) f32 (transpose of nn.Linear weight), b1: (1, 128)
    w2:     (128, V) f32,                                   b2: (1, V)
    returns (1, V) for a single context (PyTorch semantics) or (B, V) log-probs.

    tile_m=None auto-picks ~ceil(B/2) rows per grid step (multiple of 8, capped
    at 1024): at most 2 grid steps for typical batches (both v7x TCs busy, and
    step overhead is negligible), more even-sized steps for huge batches.
    """
    ids = jnp.atleast_2d(jnp.asarray(inputs, jnp.int32))        # (B, C)
    B, C = ids.shape
    V, E = emb.shape
    H = w1.shape[1]
    assert w1.shape[0] == C * E and w2.shape == (H, V)

    # ---- TPU-friendly padded shapes ----------------------------------------
    Vp = _round_up(V, 128)          # lane-dense vocab (output + one-hot width)
    if tile_m is None:
        tile_m = min(_round_up(pl.cdiv(B, 2), 8), 1024)
    Bp = _round_up(B, tile_m)

    # ---- Fold embedding into linear1 in f32 (exact; ReLU comes after) -------
    emb32 = emb.astype(jnp.float32)
    w1_32 = w1.astype(jnp.float32)
    w_fold = jnp.zeros((C * Vp, H), jnp.float32)
    for c in range(C):
        fold_c = emb32 @ w1_32[c * E:(c + 1) * E, :]            # (V, H)
        w_fold = w_fold.at[c * Vp:c * Vp + V, :].set(fold_c)
    w_fold = w_fold.astype(compute_dtype)                       # one rounding, after fold

    b1_p = b1.reshape(1, H).astype(jnp.float32)
    w2_p = jnp.zeros((H, Vp), compute_dtype).at[:, :V].set(w2.astype(compute_dtype))
    # Padded logit columns forced to -1e30 (f32) -> exp() underflows to 0.
    b2_p = jnp.full((1, Vp), -1e30, jnp.float32).at[:, :V].set(
        b2.reshape(1, V).astype(jnp.float32))
    ids_p = jnp.zeros((Bp, C), jnp.int32).at[:B, :].set(ids)

    itemsize = jnp.dtype(compute_dtype).itemsize
    cost = pl.CostEstimate(
        flops=2 * Bp * (C * Vp * H + H * Vp),
        transcendentals=Bp * (Vp + 1),
        bytes_accessed=(ids_p.size * 4
                        + (w_fold.size + w2_p.size) * itemsize
                        + (b1_p.size + b2_p.size) * 4
                        + Bp * Vp * 4),
    )

    def _param_spec(shape):
        # Constant index_map -> VMEM-resident; single-buffer to save VMEM/descriptors.
        return pl.BlockSpec(shape, lambda i: (0, 0), pipeline_mode=pl.Buffered(1))

    out = pl.pallas_call(
        _ngram_kernel,
        out_shape=jax.ShapeDtypeStruct((Bp, Vp), jnp.float32),
        grid_spec=pltpu.PrefetchScalarGridSpec(
            num_scalar_prefetch=0,
            grid=(Bp // tile_m,),
            in_specs=[
                pl.BlockSpec((tile_m, C), lambda i: (i, 0)),    # token ids (streamed)
                _param_spec((C * Vp, H)),                       # folded emb+linear1
                _param_spec((1, H)),
                _param_spec((H, Vp)),
                _param_spec((1, Vp)),
            ],
            out_specs=pl.BlockSpec((tile_m, Vp), lambda i: (i, 0)),
        ),
        compiler_params=pltpu.CompilerParams(
            dimension_semantics=("parallel",)),     # 2 even steps -> both v7x TCs busy
        cost_estimate=cost,
    )(ids_p, w_fold, b1_p, w2_p, b2_p)

    return out[:B, :V]


if __name__ == "__main__":
    # Same vocabulary construction as the reference script.
    raw_text = ('The mathematician ran .\n\nThe mathematician ran to the store .\n\n'
                'The physicist ran to the store .\n\nThe philosopher thought about it .\n\n'
                'The mathematician solved the open problem .').split()
    vocab = sorted(set(raw_text))
    vocab_size = len(vocab)          # 15
    embedding_dim = 10
    context_size = 2
    hidden = 128
    batch = 256                      # many n-gram context windows at once

    key = jax.random.PRNGKey(0)
    k_emb, k_w1, k_b1, k_w2, k_b2, k_in = jax.random.split(key, 6)

    emb = jax.random.normal(k_emb, (vocab_size, embedding_dim), jnp.float32)
    lim1 = 1.0 / jnp.sqrt(context_size * embedding_dim)
    w1 = jax.random.uniform(k_w1, (context_size * embedding_dim, hidden),
                            jnp.float32, -lim1, lim1)
    b1 = jax.random.uniform(k_b1, (1, hidden), jnp.float32, -lim1, lim1)
    lim2 = 1.0 / jnp.sqrt(hidden)
    w2 = jax.random.uniform(k_w2, (hidden, vocab_size), jnp.float32, -lim2, lim2)
    b2 = jax.random.uniform(k_b2, (1, vocab_size), jnp.float32, -lim2, lim2)

    inputs = jax.random.randint(k_in, (batch, context_size), 0, vocab_size, jnp.int32)

    # Pure-JAX reference (PyTorch forward semantics, batched over contexts).
    x_ref = jnp.take(emb, inputs, axis=0).reshape(batch, -1)
    h_ref = jnp.maximum(x_ref @ w1 + b1, 0.0)
    logits_ref = h_ref @ w2 + b2
    ref = jax.nn.log_softmax(logits_ref, axis=-1)

    # f32 path: tight tolerance (folded weights are mathematically identical).
    lp32 = jax.block_until_ready(
        ngram_forward(inputs, emb, w1, b1, w2, b2, compute_dtype=jnp.float32))
    assert lp32.shape == (batch, vocab_size)
    assert jnp.allclose(lp32, ref, atol=1e-4, rtol=1e-4), \
        float(jnp.max(jnp.abs(lp32 - ref)))
    assert jnp.allclose(jnp.sum(jnp.exp(lp32), axis=-1), 1.0, atol=1e-3)

    # Default bf16 matmul path (v5e/v6e/v7x MXU-native): looser tolerance.
    lp_bf = jax.block_until_ready(ngram_forward(inputs, emb, w1, b1, w2, b2))
    assert lp_bf.shape == (batch, vocab_size)
    assert jnp.allclose(lp_bf, ref, atol=3e-2, rtol=3e-2), \
        float(jnp.max(jnp.abs(lp_bf - ref)))
    assert jnp.allclose(jnp.sum(jnp.exp(lp_bf), axis=-1), 1.0, atol=1e-2)

    # Single-context call: identical signature/semantics to the PyTorch module.
    single = jax.block_until_ready(
        ngram_forward(inputs[0], emb, w1, b1, w2, b2, compute_dtype=jnp.float32))
    assert single.shape == (1, vocab_size)
    assert jnp.allclose(single, ref[:1], atol=1e-4, rtol=1e-4)

    print("KERNEL_OK")
</pallas_src>

<mosaic_0001>
module attributes {stable_mosaic.version = 11 : i64} {
  func.func @_ngram_kernel(%arg0: i32, %arg1: memref<128x2xi32, #tpu.memory_space<vmem>>, %arg2: memref<256x128xf32, #tpu.memory_space<vmem>>, %arg3: memref<1x128xf32, #tpu.memory_space<vmem>>, %arg4: memref<128x128xf32, #tpu.memory_space<vmem>>, %arg5: memref<1x128xf32, #tpu.memory_space<vmem>>, %arg6: memref<128x128xf32, #tpu.memory_space<vmem>>) attributes {dimension_semantics = [#tpu.dimension_semantics<parallel>], iteration_bounds = array<i64: 2>, scalar_prefetch = 0 : i64, scratch_operands = 0 : i64, tpu.core_type = #tpu.core_type<tc>, window_params = [{transform_indices = @transform_0, window_bounds = array<i64: 128, 2>}, {pipeline_mode = #tpu.pipeline_mode<synchronous>, transform_indices = @transform_1, window_bounds = array<i64: 256, 128>}, {pipeline_mode = #tpu.pipeline_mode<synchronous>, transform_indices = @transform_2, window_bounds = array<i64: 1, 128>}, {pipeline_mode = #tpu.pipeline_mode<synchronous>, transform_indices = @transform_3, window_bounds = array<i64: 128, 128>}, {pipeline_mode = #tpu.pipeline_mode<synchronous>, transform_indices = @transform_4, window_bounds = array<i64: 1, 128>}, {transform_indices = @transform_5, window_bounds = array<i64: 128, 128>}]} {
    %c0 = arith.constant 0 : index
    %c0_0 = arith.constant 0 : index
    %0 = vector.load %arg1[%c0, %c0_0] : memref<128x2xi32, #tpu.memory_space<vmem>>, vector<128x2xi32>
    %1 = tpu.iota {dimensions = array<i32: 1>} : vector<128x256xi32>
    %2 = vector.extract_strided_slice %0 {offsets = [0, 0], sizes = [128, 1], strides = [1, 1]} : vector<128x2xi32> to vector<128x1xi32>
    %3 = vector.broadcast %2 : vector<128x1xi32> to vector<128x256xi32>
    %4 = arith.cmpi eq, %1, %3 : vector<128x256xi32>
    %5 = vector.extract_strided_slice %0 {offsets = [0, 1], sizes = [128, 1], strides = [1, 1]} : vector<128x2xi32> to vector<128x1xi32>
    %c128_i32 = arith.constant 128 : i32
    %6 = vector.broadcast %c128_i32 : i32 to vector<128x1xi32>
    %7 = arith.addi %5, %6 : vector<128x1xi32>
    %8 = vector.broadcast %7 : vector<128x1xi32> to vector<128x256xi32>
    %9 = arith.cmpi eq, %1, %8 : vector<128x256xi32>
    %10 = arith.ori %4, %9 : vector<128x256xi1>
    %11 = arith.extui %10 : vector<128x256xi1> to vector<128x256xi32>
    %12 = arith.sitofp %11 : vector<128x256xi32> to vector<128x256xf32>
    %c0_1 = arith.constant 0 : index
    %c0_2 = arith.constant 0 : index
    %13 = vector.load %arg2[%c0_1, %c0_2] : memref<256x128xf32, #tpu.memory_space<vmem>>, vector<256x128xf32>
    %cst = arith.constant dense<0.000000e+00> : vector<128x128xf32>
    %14 = tpu.matmul %12, %13, %cst {dimension_numbers = #tpu.dot_dimension_numbers<[1], [0], [0], [1], [0, 0, 1, 1], [], []>} : vector<128x256xf32>, vector<256x128xf32>, vector<128x128xf32> -> vector<128x128xf32>
    %c0_3 = arith.constant 0 : index
    %c0_4 = arith.constant 0 : index
    %15 = vector.load %arg3[%c0_3, %c0_4] : memref<1x128xf32, #tpu.memory_space<vmem>>, vector<1x128xf32>
    %16 = vector.broadcast %15 : vector<1x128xf32> to vector<128x128xf32>
    %17 = arith.addf %14, %16 : vector<128x128xf32>
    %cst_5 = arith.constant 0.000000e+00 : f32
    %18 = vector.broadcast %cst_5 : f32 to vector<128x128xf32>
    %19 = arith.maximumf %17, %18 : vector<128x128xf32>
    %c0_6 = arith.constant 0 : index
    %c0_7 = arith.constant 0 : index
    %20 = vector.load %arg4[%c0_6, %c0_7] : memref<128x128xf32, #tpu.memory_space<vmem>>, vector<128x128xf32>
    %cst_8 = arith.constant dense<0.000000e+00> : vector<128x128xf32>
    %21 = tpu.matmul %19, %20, %cst_8 {dimension_numbers = #tpu.dot_dimension_numbers<[1], [0], [0], [1], [0, 0, 1, 1], [], []>} : vector<128x128xf32>, vector<128x128xf32>, vector<128x128xf32> -> vector<128x128xf32>
    %c0_9 = arith.constant 0 : index
    %c0_10 = arith.constant 0 : index
    %22 = vector.load %arg5[%c0_9, %c0_10] : memref<1x128xf32, #tpu.memory_space<vmem>>, vector<1x128xf32>
    %23 = vector.broadcast %22 : vector<1x128xf32> to vector<128x128xf32>
    %24 = arith.addf %21, %23 : vector<128x128xf32>
    %cst_11 = arith.constant dense<0xFF800000> : vector<128xf32>
    %25 = vector.multi_reduction <maximumf>, %24, %cst_11 [1] : vector<128x128xf32> to vector<128xf32>
    %26 = vector.shape_cast %25 : vector<128xf32> to vector<128x1xf32>
    %27 = vector.broadcast %26 : vector<128x1xf32> to vector<128x128xf32>
    %28 = arith.subf %24, %27 : vector<128x128xf32>
    %29 = math.exp %28 : vector<128x128xf32>
    %cst_12 = arith.constant dense<0.000000e+00> : vector<128xf32>
    %30 = vector.multi_reduction <add>, %29, %cst_12 [1] : vector<128x128xf32> to vector<128xf32>
    %31 = vector.shape_cast %30 : vector<128xf32> to vector<128x1xf32>
    %32 = math.log %31 : vector<128x1xf32>
    %33 = vector.broadcast %32 : vector<128x1xf32> to vector<128x128xf32>
    %34 = arith.subf %28, %33 : vector<128x128xf32>
    %c0_13 = arith.constant 0 : index
    %c0_14 = arith.constant 0 : index
    %35 = vector.load %arg6[%c0_13, %c0_14] : memref<128x128xf32, #tpu.memory_space<vmem>>, vector<128x128xf32>
    tpu.vector_store %arg6[%c0_13, %c0_14], %34 {strides = array<i32>} : memref<128x128xf32, #tpu.memory_space<vmem>>, vector<128x128xf32>,
    return
  }
  func.func @transform_0(%arg0: i32) -> (i32, i32) {
    %c0_i32 = arith.constant 0 : i32
    %c0_i32_0 = arith.constant 0 : i32
    return %arg0, %c0_i32 : i32, i32
  }
  func.func @transform_1(%arg0: i32) -> (i32, i32) {
    %c0_i32 = arith.constant 0 : i32
    %c0_i32_0 = arith.constant 0 : i32
    %c0_i32_1 = arith.constant 0 : i32
    return %c0_i32, %c0_i32_0 : i32, i32
  }
  func.func @transform_2(%arg0: i32) -> (i32, i32) {
    %c0_i32 = arith.constant 0 : i32
    %c0_i32_0 = arith.constant 0 : i32
    %c0_i32_1 = arith.constant 0 : i32
    return %c0_i32, %c0_i32_0 : i32, i32
  }
  func.func @transform_3(%arg0: i32) -> (i32, i32) {
    %c0_i32 = arith.constant 0 : i32
    %c0_i32_0 = arith.constant 0 : i32
    %c0_i32_1 = arith.constant 0 : i32
    return %c0_i32, %c0_i32_0 : i32, i32
  }
  func.func @transform_4(%arg0: i32) -> (i32, i32) {
    %c0_i32 = arith.constant 0 : i32
    %c0_i32_0 = arith.constant 0 : i32
    %c0_i32_1 = arith.constant 0 : i32
    return %c0_i32, %c0_i32_0 : i32, i32
  }
  func.func @transform_5(%arg0: i32) -> (i32, i32) {
    %c0_i32 = arith.constant 0 : i32
    %c0_i32_0 = arith.constant 0 : i32
    return %arg0, %c0_i32 : i32, i32
  }
}

</mosaic_0001>

<llo_original>
// kernel: tpu_custom_call.1
$region0: #{tpu_custom_call.1}
  #allocation0 [shape = 'u32[]', space=smem, size = 0x4, offset = 0x4, fixed_abs, tag = 'smem constant byte address 0x4 - core index']
  #allocation1 [shape = 'u32[144,128]{1,0:T(1,128)}', space=vmem, size = 0x12000, scoped, tag = 'internal scratch']
  %s0 = inlined_call_operand.vmem [shape: s32[256,2], index: 0, kind: input, shape index: {}]
  %s1 = inlined_call_operand.vmem [shape: f32[256,128], index: 1, kind: input, shape index: {}]
  %s2 = inlined_call_operand.vmem [shape: f32[1,128], index: 2, kind: input, shape index: {}]
  %s3 = inlined_call_operand.hbm [shape: f32[128,128], index: 3, kind: input, shape index: {}]
  %s4 = inlined_call_operand.vmem [shape: f32[1,128], index: 4, kind: input, shape index: {}]
  %s5 = inlined_call_operand.hbm [shape: f32[256,128], index: 5, kind: output, shape index: {}]
  %s6 = sld [smem:[#allocation0]]
  $region57: #{tpu_custom_call.1} parent=0
    _
  %s8 = ssub.s32 1, %s6
  %s9 = scalar_select 0, %s8, %s6
  $region1: #{tpu_custom_call.1} parent=0
    #allocation2 [shape = 'u8[65536]{0}', space=vmem, size = 0x10000, scoped, tag = 'input window, operand 3, single buffered']
    #allocation3 [shape = 's32[2]{0}', space=sflag, size = 0x8, scoped, tag = 'scoped memory for tpu_custom_call.1']
    #allocation4 [shape = 's32[2]{0}', space=sflag, size = 0x8, scoped, tag = 'scoped memory for tpu_custom_call.1']
    #allocation5 [shape = 'u8[131072]{0}', space=vmem, size = 0x20000, scoped, tag = 'output window, operand 0']
    %10 = vsyncpa [#allocation3], 0
    %11 = vsyncpa [#allocation4], 0
    %s12 = scalar_lea.sflag [#allocation4], 1
    %13 = vsyncpa %s12, 0
    loop: start=0, step=1, limit=4
    $region2: #{tpu_custom_call.1} parent=1 // loop_pre_header
      _
    $region3: #{tpu_custom_call.1} parent=1 // loop_header
      %s15 = sphi 0, %s19
      %p16 = scmp.ge.s32.totalorder %s15, 4
      %s25 = sphi 0, %s27
      %s28 = sphi 0, %s25
      %s29 = sphi 0, %s28
      %s45 = sphi 0, %s29
      %s49 = sphi 0, %s49
      %s51 = sphi 0, %s49
      %s52 = sphi 0, %s51
      %s66 = sphi 0, %s52
      %s70 = sphi 0, %s70
      %s72 = sphi 0, %s70
      %s73 = sphi 0, %s72
      %s87 = sphi 0, %s73
      %s91 = sphi 0, %s91
      %s93 = sphi 0, %s91
      %s94 = sphi 0, %s93
      %s108 = sphi 0, %s94
      %s112 = sphi 0, %s112
      %s114 = sphi 0, %s112
      %s115 = sphi 0, %s114
      %s129 = sphi 0, %s115
      %s135 = sphi 0, %s137
      %s138 = sphi 0, %s135
      %s139 = sphi 0, %s138
      %s155 = sphi 0, %s139
    $region4: #{tpu_custom_call.1} parent=1 // loop_header_branch
      %18 = sbr.rel (%p16) target = $region8
    $region5: #{tpu_custom_call.1} parent=1 // loop_body
      %s20 = ssub.s32 %s15, 1
      %s21 = ssub.s32 %s15, 2
      %s22 = sadd.s32 %s15, 1
      %s23 = ssub.s32 %s15, %s22
      %p24 = scmp.eq.s32.totalorder %s23, 0
      %s26 = sadd.s32 %s25, 1
      %s27 = scalar_select %p24, %s25, %s26
      %p30 = pneg %p24
      %p31 = scmp.eq.s32.totalorder %s15, 1
      %p32 = por %p30, %p31
      %p33 = scmp.ne.s32.totalorder %s25, %s28
      %p34 = scmp.eq.s32.totalorder %s15, 0
      %p35 = por %p33, %p34
      %p36 = scmp.ne.s32.totalorder %s25, %s28
      %p37 = scmp.eq.s32.totalorder %s20, 1
      %p38 = por %p36, %p37
      %p39 = scmp.ne.s32.totalorder %s28, %s29
      %p40 = scmp.eq.s32.totalorder %s20, 0
      %p41 = por %p39, %p40
      %p42 = scmp.ne.s32.totalorder %s28, %s29
      %p43 = scmp.eq.s32.totalorder %s21, 1
      %p44 = por %p42, %p43
      %p46 = scmp.ne.s32.totalorder %s29, %s45
      %p47 = scmp.eq.s32.totalorder %s21, 0
      %p48 = por %p46, %p47
      %s50 = sadd.s32 %s49, 1
      %p53 = scmp.eq.s32.totalorder %s15, 1
      %p54 = scmp.ne.s32.totalorder %s49, %s51
      %p55 = scmp.eq.s32.totalorder %s15, 0
      %p56 = por %p54, %p55
      %p57 = scmp.ne.s32.totalorder %s49, %s51
      %p58 = scmp.eq.s32.totalorder %s20, 1
      %p59 = por %p57, %p58
      %p60 = scmp.ne.s32.totalorder %s51, %s52
      %p61 = scmp.eq.s32.totalorder %s20, 0
      %p62 = por %p60, %p61
      %p63 = scmp.ne.s32.totalorder %s51, %s52
      %p64 = scmp.eq.s32.totalorder %s21, 1
      %p65 = por %p63, %p64
      %p67 = scmp.ne.s32.totalorder %s52, %s66
      %p68 = scmp.eq.s32.totalorder %s21, 0
      %p69 = por %p67, %p68
      %s71 = sadd.s32 %s70, 1
      %p74 = scmp.eq.s32.totalorder %s15, 1
      %p75 = scmp.ne.s32.totalorder %s70, %s72
      %p76 = scmp.eq.s32.totalorder %s15, 0
      %p77 = por %p75, %p76
      %p78 = scmp.ne.s32.totalorder %s70, %s72
      %p79 = scmp.eq.s32.totalorder %s20, 1
      %p80 = por %p78, %p79
      %p81 = scmp.ne.s32.totalorder %s72, %s73
      %p82 = scmp.eq.s32.totalorder %s20, 0
      %p83 = por %p81, %p82
      %p84 = scmp.ne.s32.totalorder %s72, %s73
      %p85 = scmp.eq.s32.totalorder %s21, 1
      %p86 = por %p84, %p85
      %p88 = scmp.ne.s32.totalorder %s73, %s87
      %p89 = scmp.eq.s32.totalorder %s21, 0
      %p90 = por %p88, %p89
      %s92 = sadd.s32 %s91, 1
      %p95 = scmp.eq.s32.totalorder %s15, 1
      %p96 = scmp.ne.s32.totalorder %s91, %s93
      %p97 = scmp.eq.s32.totalorder %s15, 0
      %p98 = por %p96, %p97
      %p99 = scmp.ne.s32.totalorder %s91, %s93
      %p100 = scmp.eq.s32.totalorder %s20, 1
      %p101 = por %p99, %p100
      %p102 = scmp.ne.s32.totalorder %s93, %s94
      %p103 = scmp.eq.s32.totalorder %s20, 0
      %p104 = por %p102, %p103
      %p105 = scmp.ne.s32.totalorder %s93, %s94
      %p106 = scmp.eq.s32.totalorder %s21, 1
      %p107 = por %p105, %p106
      %p109 = scmp.ne.s32.totalorder %s94, %s108
      %p110 = scmp.eq.s32.totalorder %s21, 0
      %p111 = por %p109, %p110
      %s113 = sadd.s32 %s112, 1
      %p116 = scmp.eq.s32.totalorder %s15, 1
      %p117 = scmp.ne.s32.totalorder %s112, %s114
      %p118 = scmp.eq.s32.totalorder %s15, 0
      %p119 = por %p117, %p118
      %p120 = scmp.ne.s32.totalorder %s112, %s114
      %p121 = scmp.eq.s32.totalorder %s20, 1
      %p122 = por %p120, %p121
      %p123 = scmp.ne.s32.totalorder %s114, %s115
      %p124 = scmp.eq.s32.totalorder %s20, 0
      %p125 = por %p123, %p124
      %p126 = scmp.ne.s32.totalorder %s114, %s115
      %p127 = scmp.eq.s32.totalorder %s21, 1
      %p128 = por %p126, %p127
      %p130 = scmp.ne.s32.totalorder %s115, %s129
      %p131 = scmp.eq.s32.totalorder %s21, 0
      %p132 = por %p130, %p131
      %s133 = ssub.s32 %s15, %s22
      %p134 = scmp.eq.s32.totalorder %s133, 0
      %s136 = sadd.s32 %s135, 1
      %s137 = scalar_select %p134, %s135, %s136
      %p140 = pneg %p134
      %p141 = scmp.eq.s32.totalorder %s15, 1
      %p142 = por %p140, %p141
      %p143 = scmp.ne.s32.totalorder %s135, %s138
      %p144 = scmp.eq.s32.totalorder %s15, 0
      %p145 = por %p143, %p144
      %p146 = scmp.ne.s32.totalorder %s135, %s138
      %p147 = scmp.eq.s32.totalorder %s20, 1
      %p148 = por %p146, %p147
      %p149 = scmp.ne.s32.totalorder %s138, %s139
      %p150 = scmp.eq.s32.totalorder %s20, 0
      %p151 = por %p149, %p150
      %p152 = scmp.ne.s32.totalorder %s138, %s139
      %p153 = scmp.eq.s32.totalorder %s21, 1
      %p154 = por %p152, %p153
      %p156 = scmp.ne.s32.totalorder %s139, %s155
      %p157 = scmp.eq.s32.totalorder %s21, 0
      %p158 = por %p156, %p157
      %p159 = scmp.le.s32.totalorder 1, %s15
      %p160 = scmp.lt.s32.totalorder %s15, 3
      %p161 = pnand %p159, %p160
      %p162 = pneg %p161
      // Predicated region
      $region9: #{tpu_custom_call.1} parent=5 // pred_check
        _
      $region10: #{tpu_custom_call.1} parent=5 // pred_check_branch
        %164 = sbr.rel (%p161) target = $region12
      $region11: #{tpu_custom_call.1} parent=5 // pred_region
        %s165 = ssub.s32 %s15, 1
        // Predicated region
        $region13: #{tpu_custom_call.1} parent=11 // pred_check
          %p166 = pneg %p62
        $region14: #{tpu_custom_call.1} parent=11 // pred_check_branch
          %168 = sbr.rel (%p166) target = $region16
        $region15: #{tpu_custom_call.1} parent=11 // pred_region
          _
        $region16: #{tpu_custom_call.1} parent=11 // pred_fallthru
          _
        // Predicated region
        $region17: #{tpu_custom_call.1} parent=11 // pred_check
          %p169 = pneg %p83
        $region18: #{tpu_custom_call.1} parent=11 // pred_check_branch
          %171 = sbr.rel (%p169) target = $region20
        $region19: #{tpu_custom_call.1} parent=11 // pred_region
          _
        $region20: #{tpu_custom_call.1} parent=11 // pred_fallthru
          _
        // Predicated region
        $region21: #{tpu_custom_call.1} parent=11 // pred_check
          %p172 = pneg %p104
        $region22: #{tpu_custom_call.1} parent=11 // pred_check_branch
          %174 = sbr.rel (%p172) target = $region24
        $region23: #{tpu_custom_call.1} parent=11 // pred_region
          %s176 = ssub.s32 2048, 2048
          %177 = vsyncadd [#allocation3], %s176
          %s178 = sshll.u32 [#allocation2], 4
          %s179 = int_to_ptr.vmem [resolvable:$true] %s178
          %184 = dma.hbm_to_vmem [thread:$0]  %s3, 2048, %s179, [#allocation3], 128, 128, 8
        $region24: #{tpu_custom_call.1} parent=11 // pred_fallthru
          _
        // Predicated region
        $region25: #{tpu_custom_call.1} parent=11 // pred_check
          %p185 = pneg %p125
        $region26: #{tpu_custom_call.1} parent=11 // pred_check_branch
          %187 = sbr.rel (%p185) target = $region28
        $region27: #{tpu_custom_call.1} parent=11 // pred_region
          _
        $region28: #{tpu_custom_call.1} parent=11 // pred_fallthru
          _
      $region12: #{tpu_custom_call.1} parent=5 // pred_fallthru
        _
      %p188 = scmp.lt.s32.totalorder %s15, 2
      // Predicated region
      $region29: #{tpu_custom_call.1} parent=5 // pred_check
        %p189 = pneg %p188
      $region30: #{tpu_custom_call.1} parent=5 // pred_check_branch
        %191 = sbr.rel (%p189) target = $region32
      $region31: #{tpu_custom_call.1} parent=5 // pred_region
        // Predicated region
        $region33: #{tpu_custom_call.1} parent=31 // pred_check
          %p192 = pneg %p35
        $region34: #{tpu_custom_call.1} parent=31 // pred_check_branch
          %194 = sbr.rel (%p192) target = $region36
        $region35: #{tpu_custom_call.1} parent=31 // pred_region
          %s195 = smul.u32 16, %s15
          %p196 = scmp.lt.s32.totalorder %s195, 31
          %s197 = scalar_select %p196, %s195, 31
          %s198 = smul.addr %s197, 8
          %s199 = scalar_lea.vmem %s0, %s198
          %s200 = smul.u32 16, %s15
        $region36: #{tpu_custom_call.1} parent=31 // pred_fallthru
          _
      $region32: #{tpu_custom_call.1} parent=5 // pred_fallthru
        _
      %p201 = scmp.le.s32.totalorder 1, %s15
      %p202 = scmp.lt.s32.totalorder %s15, 3
      %p203 = pnand %p201, %p202
      %p204 = pneg %p203
      // Predicated region
      $region37: #{tpu_custom_call.1} parent=5 // pred_check
        _
      $region38: #{tpu_custom_call.1} parent=5 // pred_check_branch
        %206 = sbr.rel (%p203) target = $region40
      $region39: #{tpu_custom_call.1} parent=5 // pred_region
        %s207 = ssub.s32 %s15, 1
        // Predicated region
        $region41: #{tpu_custom_call.1} parent=39 // pred_check
          %p208 = pneg %p104
        $region42: #{tpu_custom_call.1} parent=39 // pred_check_branch
          %210 = sbr.rel (%p208) target = $region44
        $region43: #{tpu_custom_call.1} parent=39 // pred_region
          %211 = dma.done [#allocation3], 2048
        $region44: #{tpu_custom_call.1} parent=39 // pred_fallthru
          _
        %s212 = smul.u32 16, %s20
        %p213 = scmp.lt.s32.totalorder %s212, 31
        %s214 = scalar_select %p213, %s212, 31
        %s215 = smul.addr %s214, 8
        %s216 = scalar_lea.vmem %s0, %s215
        %p217 = pneg %p41
        %p218 = pneg %p38
        %p219 = pneg %p62
        %p220 = pneg %p59
        %p221 = pneg %p83
        %p222 = pneg %p80
        %p223 = pneg %p104
        %p224 = pneg %p101
        %p225 = pneg %p125
        %p226 = pneg %p122
        %p227 = pneg %p151
        %p228 = pneg %p148
        %s229 = sand.u32 %s138, 1
        %s230 = scalar_lea.sflag [#allocation4], %s229
        %s231 = sand.u32 %s138, 1
        %s232 = smul.addr %s231, 128
        %s233 = scalar_lea.vmem [#allocation5], %s232
        %s234 = smul.u32 16, %s20
        %p235 = scmp.lt.s32.totalorder %s234, 31
        %s236 = scalar_select %p235, %s234, 31
        %s237 = smul.addr %s236, 8
        %s238 = scalar_lea.vmem %s0, %s237
        %s239 = smul.u32 16, %s20
        %s240 = smul.u32 16, %s20
        %v241 = vld [vmem:[%s238] sm:$0xff]
        %v242 = vld [vmem:[%s238 + $0x8] sm:$0xff]
        %v243 = vld [vmem:[%s238 + $0x10] sm:$0xff]
        %v244 = vld [vmem:[%s238 + $0x18] sm:$0xff]
        %v245 = vld [vmem:[%s238 + $0x20] sm:$0xff]
        %v246 = vld [vmem:[%s238 + $0x28] sm:$0xff]
        %v247 = vld [vmem:[%s238 + $0x30] sm:$0xff]
        %v248 = vld [vmem:[%s238 + $0x38] sm:$0xff]
        %v249 = vld [vmem:[%s238 + $0x40] sm:$0xff]
        %v250 = vld [vmem:[%s238 + $0x48] sm:$0xff]
        %v251 = vld [vmem:[%s238 + $0x50] sm:$0xff]
        %v252 = vld [vmem:[%s238 + $0x58] sm:$0xff]
        %v253 = vld [vmem:[%s238 + $0x60] sm:$0xff]
        %v254 = vld [vmem:[%s238 + $0x68] sm:$0xff]
        %v255 = vld [vmem:[%s238 + $0x70] sm:$0xff]
        %v256 = vld [vmem:[%s238 + $0x78] sm:$0xff]
        %v257 = vlaneseq
        %v258 = vand.u32 %v257, 127
        %v259 = vadd.s32 %v258, 128
        %260 = vset.pattern.permute.xlu0 0
        %261 = vperm.xlu0 %260, %v241
        %v262 = vpop.permute.xlu0 %261
        %263 = vset.pattern.permute.xlu0 0
        %264 = vperm.xlu0 %263, %v242
        %v265 = vpop.permute.xlu0 %264
        %266 = vset.pattern.permute.xlu0 0
        %267 = vperm.xlu0 %266, %v243
        %v268 = vpop.permute.xlu0 %267
        %269 = vset.pattern.permute.xlu0 0
        %270 = vperm.xlu0 %269, %v244
        %v271 = vpop.permute.xlu0 %270
        %272 = vset.pattern.permute.xlu0 0
        %273 = vperm.xlu0 %272, %v245
        %v274 = vpop.permute.xlu0 %273
        %275 = vset.pattern.permute.xlu0 0
        %276 = vperm.xlu0 %275, %v246
        %v277 = vpop.permute.xlu0 %276
        %278 = vset.pattern.permute.xlu0 0
        %279 = vperm.xlu0 %278, %v247
        %v280 = vpop.permute.xlu0 %279
        %281 = vset.pattern.permute.xlu0 0
        %282 = vperm.xlu0 %281, %v248
        %v283 = vpop.permute.xlu0 %282
        %284 = vset.pattern.permute.xlu0 0
        %285 = vperm.xlu0 %284, %v249
        %v286 = vpop.permute.xlu0 %285
        %287 = vset.pattern.permute.xlu0 0
        %288 = vperm.xlu0 %287, %v250
        %v289 = vpop.permute.xlu0 %288
        %290 = vset.pattern.permute.xlu0 0
        %291 = vperm.xlu0 %290, %v251
        %v292 = vpop.permute.xlu0 %291
        %293 = vset.pattern.permute.xlu0 0
        %294 = vperm.xlu0 %293, %v252
        %v295 = vpop.permute.xlu0 %294
        %296 = vset.pattern.permute.xlu0 0
        %297 = vperm.xlu0 %296, %v253
        %v298 = vpop.permute.xlu0 %297
        %299 = vset.pattern.permute.xlu0 0
        %300 = vperm.xlu0 %299, %v254
        %v301 = vpop.permute.xlu0 %300
        %302 = vset.pattern.permute.xlu0 0
        %303 = vperm.xlu0 %302, %v255
        %v304 = vpop.permute.xlu0 %303
        %305 = vset.pattern.permute.xlu0 0
        %306 = vperm.xlu0 %305, %v256
        %v307 = vpop.permute.xlu0 %306
        %vm308 = vcmp.eq.s32.totalorder %v258, %v262
        %vm309 = vcmp.eq.s32.totalorder %v259, %v262
        %vm310 = vcmp.eq.s32.totalorder %v258, %v265
        %vm311 = vcmp.eq.s32.totalorder %v259, %v265
        %vm312 = vcmp.eq.s32.totalorder %v258, %v268
        %vm313 = vcmp.eq.s32.totalorder %v259, %v268
        %vm314 = vcmp.eq.s32.totalorder %v258, %v271
        %vm315 = vcmp.eq.s32.totalorder %v259, %v271
        %vm316 = vcmp.eq.s32.totalorder %v258, %v274
        %vm317 = vcmp.eq.s32.totalorder %v259, %v274
        %vm318 = vcmp.eq.s32.totalorder %v258, %v277
        %vm319 = vcmp.eq.s32.totalorder %v259, %v277
        %vm320 = vcmp.eq.s32.totalorder %v258, %v280
        %vm321 = vcmp.eq.s32.totalorder %v259, %v280
        %vm322 = vcmp.eq.s32.totalorder %v258, %v283
        %vm323 = vcmp.eq.s32.totalorder %v259, %v283
        %vm324 = vcmp.eq.s32.totalorder %v258, %v286
        %vm325 = vcmp.eq.s32.totalorder %v259, %v286
        %vm326 = vcmp.eq.s32.totalorder %v258, %v289
        %vm327 = vcmp.eq.s32.totalorder %v259, %v289
        %vm328 = vcmp.eq.s32.totalorder %v258, %v292
        %vm329 = vcmp.eq.s32.totalorder %v259, %v292
        %vm330 = vcmp.eq.s32.totalorder %v258, %v295
        %vm331 = vcmp.eq.s32.totalorder %v259, %v295
        %vm332 = vcmp.eq.s32.totalorder %v258, %v298
        %vm333 = vcmp.eq.s32.totalorder %v259, %v298
        %vm334 = vcmp.eq.s32.totalorder %v258, %v301
        %vm335 = vcmp.eq.s32.totalorder %v259, %v301
        %vm336 = vcmp.eq.s32.totalorder %v258, %v304
        %vm337 = vcmp.eq.s32.totalorder %v259, %v304
        %vm338 = vcmp.eq.s32.totalorder %v258, %v307
        %vm339 = vcmp.eq.s32.totalorder %v259, %v307
        %v340 = vadd.s32 %v241, 128
        %v341 = vadd.s32 %v242, 128
        %v342 = vadd.s32 %v243, 128
        %v343 = vadd.s32 %v244, 128
        %v344 = vadd.s32 %v245, 128
        %v345 = vadd.s32 %v246, 128
        %v346 = vadd.s32 %v247, 128
        %v347 = vadd.s32 %v248, 128
        %v348 = vadd.s32 %v249, 128
        %v349 = vadd.s32 %v250, 128
        %v350 = vadd.s32 %v251, 128
        %v351 = vadd.s32 %v252, 128
        %v352 = vadd.s32 %v253, 128
        %v353 = vadd.s32 %v254, 128
        %v354 = vadd.s32 %v255, 128
        %v355 = vadd.s32 %v256, 128
        %356 = vset.pattern.permute.xlu0 1
        %357 = vperm.xlu0 %356, %v340
        %v358 = vpop.permute.xlu0 %357
        %359 = vset.pattern.permute.xlu0 1
        %360 = vperm.xlu0 %359, %v341
        %v361 = vpop.permute.xlu0 %360
        %362 = vset.pattern.permute.xlu0 1
        %363 = vperm.xlu0 %362, %v342
        %v364 = vpop.permute.xlu0 %363
        %365 = vset.pattern.permute.xlu0 1
        %366 = vperm.xlu0 %365, %v343
        %v367 = vpop.permute.xlu0 %366
        %368 = vset.pattern.permute.xlu0 1
        %369 = vperm.xlu0 %368, %v344
        %v370 = vpop.permute.xlu0 %369
        %371 = vset.pattern.permute.xlu0 1
        %372 = vperm.xlu0 %371, %v345
        %v373 = vpop.permute.xlu0 %372
        %374 = vset.pattern.permute.xlu0 1
        %375 = vperm.xlu0 %374, %v346
        %v376 = vpop.permute.xlu0 %375
        %377 = vset.pattern.permute.xlu0 1
        %378 = vperm.xlu0 %377, %v347
        %v379 = vpop.permute.xlu0 %378
        %380 = vset.pattern.permute.xlu0 1
        %381 = vperm.xlu0 %380, %v348
        %v382 = vpop.permute.xlu0 %381
        %383 = vset.pattern.permute.xlu0 1
        %384 = vperm.xlu0 %383, %v349
        %v385 = vpop.permute.xlu0 %384
        %386 = vset.pattern.permute.xlu0 1
        %387 = vperm.xlu0 %386, %v350
        %v388 = vpop.permute.xlu0 %387
        %389 = vset.pattern.permute.xlu0 1
        %390 = vperm.xlu0 %389, %v351
        %v391 = vpop.permute.xlu0 %390
        %392 = vset.pattern.permute.xlu0 1
        %393 = vperm.xlu0 %392, %v352
        %v394 = vpop.permute.xlu0 %393
        %395 = vset.pattern.permute.xlu0 1
        %396 = vperm.xlu0 %395, %v353
        %v397 = vpop.permute.xlu0 %396
        %398 = vset.pattern.permute.xlu0 1
        %399 = vperm.xlu0 %398, %v354
        %v400 = vpop.permute.xlu0 %399
        %401 = vset.pattern.permute.xlu0 1
        %402 = vperm.xlu0 %401, %v355
        %v403 = vpop.permute.xlu0 %402
        %vm404 = vcmp.eq.s32.totalorder %v258, %v358
        %vm405 = vcmp.eq.s32.totalorder %v259, %v358
        %vm406 = vcmp.eq.s32.totalorder %v258, %v361
        %vm407 = vcmp.eq.s32.totalorder %v259, %v361
        %vm408 = vcmp.eq.s32.totalorder %v258, %v364
        %vm409 = vcmp.eq.s32.totalorder %v259, %v364
        %vm410 = vcmp.eq.s32.totalorder %v258, %v367
        %vm411 = vcmp.eq.s32.totalorder %v259, %v367
        %vm412 = vcmp.eq.s32.totalorder %v258, %v370
        %vm413 = vcmp.eq.s32.totalorder %v259, %v370
        %vm414 = vcmp.eq.s32.totalorder %v258, %v373
        %vm415 = vcmp.eq.s32.totalorder %v259, %v373
        %vm416 = vcmp.eq.s32.totalorder %v258, %v376
        %vm417 = vcmp.eq.s32.totalorder %v259, %v376
        %vm418 = vcmp.eq.s32.totalorder %v258, %v379
        %vm419 = vcmp.eq.s32.totalorder %v259, %v379
        %vm420 = vcmp.eq.s32.totalorder %v258, %v382
        %vm421 = vcmp.eq.s32.totalorder %v259, %v382
        %vm422 = vcmp.eq.s32.totalorder %v258, %v385
        %vm423 = vcmp.eq.s32.totalorder %v259, %v385
        %vm424 = vcmp.eq.s32.totalorder %v258, %v388
        %vm425 = vcmp.eq.s32.totalorder %v259, %v388
        %vm426 = vcmp.eq.s32.totalorder %v258, %v391
        %vm427 = vcmp.eq.s32.totalorder %v259, %v391
        %vm428 = vcmp.eq.s32.totalorder %v258, %v394
        %vm429 = vcmp.eq.s32.totalorder %v259, %v394
        %vm430 = vcmp.eq.s32.totalorder %v258, %v397
        %vm431 = vcmp.eq.s32.totalorder %v259, %v397
        %vm432 = vcmp.eq.s32.totalorder %v258, %v400
        %vm433 = vcmp.eq.s32.totalorder %v259, %v400
        %vm434 = vcmp.eq.s32.totalorder %v258, %v403
        %vm435 = vcmp.eq.s32.totalorder %v259, %v403
        %vm436 = vmor %vm308, %vm404
        %vm437 = vmor %vm309, %vm405
        %vm438 = vmor %vm310, %vm406
        %vm439 = vmor %vm311, %vm407
        %vm440 = vmor %vm312, %vm408
        %vm441 = vmor %vm313, %vm409
        %vm442 = vmor %vm314, %vm410
        %vm443 = vmor %vm315, %vm411
        %vm444 = vmor %vm316, %vm412
        %vm445 = vmor %vm317, %vm413
        %vm446 = vmor %vm318, %vm414
        %vm447 = vmor %vm319, %vm415
        %vm448 = vmor %vm320, %vm416
        %vm449 = vmor %vm321, %vm417
        %vm450 = vmor %vm322, %vm418
        %vm451 = vmor %vm323, %vm419
        %vm452 = vmor %vm324, %vm420
        %vm453 = vmor %vm325, %vm421
        %vm454 = vmor %vm326, %vm422
        %vm455 = vmor %vm327, %vm423
        %vm456 = vmor %vm328, %vm424
        %vm457 = vmor %vm329, %vm425
        %vm458 = vmor %vm330, %vm426
        %vm459 = vmor %vm331, %vm427
        %vm460 = vmor %vm332, %vm428
        %vm461 = vmor %vm333, %vm429
        %vm462 = vmor %vm334, %vm430
        %vm463 = vmor %vm335, %vm431
        %vm464 = vmor %vm336, %vm432
        %vm465 = vmor %vm337, %vm433
        %vm466 = vmor %vm338, %vm434
        %vm467 = vmor %vm339, %vm435
        %v468 = vsel %vm436, 1, 0
        %v469 = vsel %vm437, 1, 0
        %v470 = vsel %vm438, 1, 0
        %v471 = vsel %vm439, 1, 0
        %v472 = vsel %vm440, 1, 0
        %v473 = vsel %vm441, 1, 0
        %v474 = vsel %vm442, 1, 0
        %v475 = vsel %vm443, 1, 0
        %v476 = vsel %vm444, 1, 0
        %v477 = vsel %vm445, 1, 0
        %v478 = vsel %vm446, 1, 0
        %v479 = vsel %vm447, 1, 0
        %v480 = vsel %vm448, 1, 0
        %v481 = vsel %vm449, 1, 0
        %v482 = vsel %vm450, 1, 0
        %v483 = vsel %vm451, 1, 0
        %v484 = vsel %vm452, 1, 0
        %v485 = vsel %vm453, 1, 0
        %v486 = vsel %vm454, 1, 0
        %v487 = vsel %vm455, 1, 0
        %v488 = vsel %vm456, 1, 0
        %v489 = vsel %vm457, 1, 0
        %v490 = vsel %vm458, 1, 0
        %v491 = vsel %vm459, 1, 0
        %v492 = vsel %vm460, 1, 0
        %v493 = vsel %vm461, 1, 0
        %v494 = vsel %vm462, 1, 0
        %v495 = vsel %vm463, 1, 0
        %v496 = vsel %vm464, 1, 0
        %v497 = vsel %vm465, 1, 0
        %v498 = vsel %vm466, 1, 0
        %v499 = vsel %vm467, 1, 0
        %v500 = vcvt.s32.f32 %v468
        %v501 = vcvt.s32.f32 %v469
        %v502 = vcvt.s32.f32 %v470
        %v503 = vcvt.s32.f32 %v471
        %v504 = vcvt.s32.f32 %v472
        %v505 = vcvt.s32.f32 %v473
        %v506 = vcvt.s32.f32 %v474
        %v507 = vcvt.s32.f32 %v475
        %v508 = vcvt.s32.f32 %v476
        %v509 = vcvt.s32.f32 %v477
        %v510 = vcvt.s32.f32 %v478
        %v511 = vcvt.s32.f32 %v479
        %v512 = vcvt.s32.f32 %v480
        %v513 = vcvt.s32.f32 %v481
        %v514 = vcvt.s32.f32 %v482
        %v515 = vcvt.s32.f32 %v483
        %v516 = vcvt.s32.f32 %v484
        %v517 = vcvt.s32.f32 %v485
        %v518 = vcvt.s32.f32 %v486
        %v519 = vcvt.s32.f32 %v487
        %v520 = vcvt.s32.f32 %v488
        %v521 = vcvt.s32.f32 %v489
        %v522 = vcvt.s32.f32 %v490
        %v523 = vcvt.s32.f32 %v491
        %v524 = vcvt.s32.f32 %v492
        %v525 = vcvt.s32.f32 %v493
        %v526 = vcvt.s32.f32 %v494
        %v527 = vcvt.s32.f32 %v495
        %v528 = vcvt.s32.f32 %v496
        %v529 = vcvt.s32.f32 %v497
        %v530 = vcvt.s32.f32 %v498
        %v531 = vcvt.s32.f32 %v499
        %v532 = vld [vmem:[%s1] sm:$0xff]
        %v533 = vld [vmem:[%s1 + $0x8] sm:$0xff]
        %v534 = vld [vmem:[%s1 + $0x10] sm:$0xff]
        %v535 = vld [vmem:[%s1 + $0x18] sm:$0xff]
        %v536 = vld [vmem:[%s1 + $0x20] sm:$0xff]
        %v537 = vld [vmem:[%s1 + $0x28] sm:$0xff]
        %v538 = vld [vmem:[%s1 + $0x30] sm:$0xff]
        %v539 = vld [vmem:[%s1 + $0x38] sm:$0xff]
        %v540 = vld [vmem:[%s1 + $0x40] sm:$0xff]
        %v541 = vld [vmem:[%s1 + $0x48] sm:$0xff]
        %v542 = vld [vmem:[%s1 + $0x50] sm:$0xff]
        %v543 = vld [vmem:[%s1 + $0x58] sm:$0xff]
        %v544 = vld [vmem:[%s1 + $0x60] sm:$0xff]
        %v545 = vld [vmem:[%s1 + $0x68] sm:$0xff]
        %v546 = vld [vmem:[%s1 + $0x70] sm:$0xff]
        %v547 = vld [vmem:[%s1 + $0x78] sm:$0xff]
        %v548 = vld [vmem:[%s1 + $0x80] sm:$0xff]
        %v549 = vld [vmem:[%s1 + $0x88] sm:$0xff]
        %v550 = vld [vmem:[%s1 + $0x90] sm:$0xff]
        %v551 = vld [vmem:[%s1 + $0x98] sm:$0xff]
        %v552 = vld [vmem:[%s1 + $0xa0] sm:$0xff]
        %v553 = vld [vmem:[%s1 + $0xa8] sm:$0xff]
        %v554 = vld [vmem:[%s1 + $0xb0] sm:$0xff]
        %v555 = vld [vmem:[%s1 + $0xb8] sm:$0xff]
        %v556 = vld [vmem:[%s1 + $0xc0] sm:$0xff]
        %v557 = vld [vmem:[%s1 + $0xc8] sm:$0xff]
        %v558 = vld [vmem:[%s1 + $0xd0] sm:$0xff]
        %v559 = vld [vmem:[%s1 + $0xd8] sm:$0xff]
        %v560 = vld [vmem:[%s1 + $0xe0] sm:$0xff]
        %v561 = vld [vmem:[%s1 + $0xe8] sm:$0xff]
        %v562 = vld [vmem:[%s1 + $0xf0] sm:$0xff]
        %v563 = vld [vmem:[%s1 + $0xf8] sm:$0xff]
        %v564 = vld [vmem:[%s2] sm:$0x1]
        %v566 = vlaneseq
        %v567 = vshrl.u32 %v566, 7
        %v568 = vsub.s32 0, %v567
        %v569 = vrot.slane %v564, %v568
        %571 = vmatprep.subr.mxu0 0.0
        %572 = vmatpush1.msra.mxu0 %v547
        %573 = vmatprep.subr.mxu0 0.0
        %574 = vmatpush1.msra.mxu0 %v546
        %575 = vmatprep.subr.mxu0 0.0
        %576 = vmatpush1.msra.mxu0 %v545
        %577 = vmatprep.subr.mxu0 0.0
        %578 = vmatpush1.msra.mxu0 %v544
        %579 = vmatprep.subr.mxu0 0.0
        %580 = vmatpush1.msra.mxu0 %v543
        %581 = vmatprep.subr.mxu0 0.0
        %582 = vmatpush1.msra.mxu0 %v542
        %583 = vmatprep.subr.mxu0 0.0
        %584 = vmatpush1.msra.mxu0 %v541
        %585 = vmatprep.subr.mxu0 0.0
        %586 = vmatpush1.msra.mxu0 %v540
        %587 = vmatprep.subr.mxu0 0.0
        %588 = vmatpush1.msra.mxu0 %v539
        %589 = vmatprep.subr.mxu0 0.0
        %590 = vmatpush1.msra.mxu0 %v538
        %591 = vmatprep.subr.mxu0 0.0
        %592 = vmatpush1.msra.mxu0 %v537
        %593 = vmatprep.subr.mxu0 0.0
        %594 = vmatpush1.msra.mxu0 %v536
        %595 = vmatprep.subr.mxu0 0.0
        %596 = vmatpush1.msra.mxu0 %v535
        %597 = vmatprep.subr.mxu0 0.0
        %598 = vmatpush1.msra.mxu0 %v534
        %599 = vmatprep.subr.mxu0 0.0
        %600 = vmatpush1.msra.mxu0 %v533
        %601 = vmatprep.subr.mxu0 0.0
        %602 = vmatpush1.msra.mxu0 %v532
        %603 = vmatprep.subr.mxu0 0.0
        %604 = vmatpush2.msra.mxu0 %v563
        %605 = vmatprep.subr.mxu0 0.0
        %606 = vmatpush2.msra.mxu0 %v562
        %607 = vmatprep.subr.mxu0 0.0
        %608 = vmatpush2.msra.mxu0 %v561
        %609 = vmatprep.subr.mxu0 0.0
        %610 = vmatpush2.msra.mxu0 %v560
        %611 = vmatprep.subr.mxu0 0.0
        %612 = vmatpush2.msra.mxu0 %v559
        %613 = vmatprep.subr.mxu0 0.0
        %614 = vmatpush2.msra.mxu0 %v558
        %615 = vmatprep.subr.mxu0 0.0
        %616 = vmatpush2.msra.mxu0 %v557
        %617 = vmatprep.subr.mxu0 0.0
        %618 = vmatpush2.msra.mxu0 %v556
        %619 = vmatprep.subr.mxu0 0.0
        %620 = vmatpush2.msra.mxu0 %v555
        %621 = vmatprep.subr.mxu0 0.0
        %622 = vmatpush2.msra.mxu0 %v554
        %623 = vmatprep.subr.mxu0 0.0
        %624 = vmatpush2.msra.mxu0 %v553
        %625 = vmatprep.subr.mxu0 0.0
        %626 = vmatpush2.msra.mxu0 %v552
        %627 = vmatprep.subr.mxu0 0.0
        %628 = vmatpush2.msra.mxu0 %v551
        %629 = vmatprep.subr.mxu0 0.0
        %630 = vmatpush2.msra.mxu0 %v550
        %631 = vmatprep.subr.mxu0 0.0
        %632 = vmatpush2.msra.mxu0 %v549
        %633 = vmatprep.subr.mxu0 0.0
        %634 = vmatpush2.msra.mxu0 %v548
        %635 = vmatprep.mubr.f32.mxu0 %v501
        %636 = vmatmul.mubr.f32.gmra.mxu0 %v500
        %v637 = vpop.f32.mrf.mxu0
        %v638 = vadd.f32 %v569, %v637
        %v639 = vpop.f32.mrf.mxu0
        %640 = vmatprep.mubr.f32.mxu0 %v503
        %641 = vmatmul.mubr.f32.gmra.mxu0 %v502
        %v642 = vpop.f32.mrf.mxu0
        %v643 = vadd.f32 %v569, %v642
        %v644 = vpop.f32.mrf.mxu0
        %645 = vmatprep.mubr.f32.mxu0 %v505
        %646 = vmatmul.mubr.f32.gmra.mxu0 %v504
        %v647 = vpop.f32.mrf.mxu0
        %v648 = vadd.f32 %v569, %v647
        %v649 = vpop.f32.mrf.mxu0
        %650 = vmatprep.mubr.f32.mxu0 %v507
        %651 = vmatmul.mubr.f32.gmra.mxu0 %v506
        %v652 = vpop.f32.mrf.mxu0
        %v653 = vadd.f32 %v569, %v652
        %v654 = vpop.f32.mrf.mxu0
        %655 = vmatprep.mubr.f32.mxu0 %v509
        %656 = vmatmul.mubr.f32.gmra.mxu0 %v508
        %v657 = vpop.f32.mrf.mxu0
        %v658 = vadd.f32 %v569, %v657
        %v659 = vpop.f32.mrf.mxu0
        %660 = vmatprep.mubr.f32.mxu0 %v511
        %661 = vmatmul.mubr.f32.gmra.mxu0 %v510
        %v662 = vpop.f32.mrf.mxu0
        %v663 = vadd.f32 %v569, %v662
        %v664 = vpop.f32.mrf.mxu0
        %665 = vmatprep.mubr.f32.mxu0 %v513
        %666 = vmatmul.mubr.f32.gmra.mxu0 %v512
        %v667 = vpop.f32.mrf.mxu0
        %v668 = vadd.f32 %v569, %v667
        %v669 = vpop.f32.mrf.mxu0
        %670 = vmatprep.mubr.f32.mxu0 %v515
        %671 = vmatmul.mubr.f32.gmra.mxu0 %v514
        %v672 = vpop.f32.mrf.mxu0
        %v673 = vadd.f32 %v569, %v672
        %v674 = vpop.f32.mrf.mxu0
        %675 = vmatprep.mubr.f32.mxu0 %v517
        %676 = vmatmul.mubr.f32.gmra.mxu0 %v516
        %v677 = vpop.f32.mrf.mxu0
        %v678 = vadd.f32 %v569, %v677
        %v679 = vpop.f32.mrf.mxu0
        %680 = vmatprep.mubr.f32.mxu0 %v519
        %681 = vmatmul.mubr.f32.gmra.mxu0 %v518
        %v682 = vpop.f32.mrf.mxu0
        %v683 = vadd.f32 %v569, %v682
        %v684 = vpop.f32.mrf.mxu0
        %685 = vmatprep.mubr.f32.mxu0 %v521
        %686 = vmatmul.mubr.f32.gmra.mxu0 %v520
        %v687 = vpop.f32.mrf.mxu0
        %v688 = vadd.f32 %v569, %v687
        %v689 = vpop.f32.mrf.mxu0
        %690 = vmatprep.mubr.f32.mxu0 %v523
        %691 = vmatmul.mubr.f32.gmra.mxu0 %v522
        %v692 = vpop.f32.mrf.mxu0
        %v693 = vadd.f32 %v569, %v692
        %v694 = vpop.f32.mrf.mxu0
        %695 = vmatprep.mubr.f32.mxu0 %v525
        %696 = vmatmul.mubr.f32.gmra.mxu0 %v524
        %v697 = vpop.f32.mrf.mxu0
        %v698 = vadd.f32 %v569, %v697
        %v699 = vpop.f32.mrf.mxu0
        %700 = vmatprep.mubr.f32.mxu0 %v527
        %701 = vmatmul.mubr.f32.gmra.mxu0 %v526
        %v702 = vpop.f32.mrf.mxu0
        %v703 = vadd.f32 %v569, %v702
        %v704 = vpop.f32.mrf.mxu0
        %705 = vmatprep.mubr.f32.mxu0 %v529
        %706 = vmatmul.mubr.f32.gmra.mxu0 %v528
        %v707 = vpop.f32.mrf.mxu0
        %v708 = vadd.f32 %v569, %v707
        %v709 = vpop.f32.mrf.mxu0
        %710 = vmatprep.mubr.f32.mxu0 %v531
        %711 = vmatmul.mubr.f32.gmra.mxu0 %v530
        %v712 = vpop.f32.mrf.mxu0
        %v713 = vadd.f32 %v569, %v712
        %v714 = vpop.f32.mrf.mxu0
        %715 = vdwg.mxu0
        %v716 = vmax.f32 %v638, 0.0
        %v717 = vmax.f32 %v643, 0.0
        %v718 = vmax.f32 %v648, 0.0
        %v719 = vmax.f32 %v653, 0.0
        %v720 = vmax.f32 %v658, 0.0
        %v721 = vmax.f32 %v663, 0.0
        %v722 = vmax.f32 %v668, 0.0
        %v723 = vmax.f32 %v673, 0.0
        %v724 = vmax.f32 %v678, 0.0
        %v725 = vmax.f32 %v683, 0.0
        %v726 = vmax.f32 %v688, 0.0
        %v727 = vmax.f32 %v693, 0.0
        %v728 = vmax.f32 %v698, 0.0
        %v729 = vmax.f32 %v703, 0.0
        %v730 = vmax.f32 %v708, 0.0
        %v731 = vmax.f32 %v713, 0.0
        %v732 = vld [vmem:[#allocation2] sm:$0xff]
        %v733 = vld [vmem:[#allocation2 + $0x8] sm:$0xff]
        %v734 = vld [vmem:[#allocation2 + $0x10] sm:$0xff]
        %v735 = vld [vmem:[#allocation2 + $0x18] sm:$0xff]
        %v736 = vld [vmem:[#allocation2 + $0x20] sm:$0xff]
        %v737 = vld [vmem:[#allocation2 + $0x28] sm:$0xff]
        %v738 = vld [vmem:[#allocation2 + $0x30] sm:$0xff]
        %v739 = vld [vmem:[#allocation2 + $0x38] sm:$0xff]
        %v740 = vld [vmem:[#allocation2 + $0x40] sm:$0xff]
        %v741 = vld [vmem:[#allocation2 + $0x48] sm:$0xff]
        %v742 = vld [vmem:[#allocation2 + $0x50] sm:$0xff]
        %v743 = vld [vmem:[#allocation2 + $0x58] sm:$0xff]
        %v744 = vld [vmem:[#allocation2 + $0x60] sm:$0xff]
        %v745 = vld [vmem:[#allocation2 + $0x68] sm:$0xff]
        %v746 = vld [vmem:[#allocation2 + $0x70] sm:$0xff]
        %v747 = vld [vmem:[#allocation2 + $0x78] sm:$0xff]
        %v748 = vld [vmem:[%s4] sm:$0x1]
        %v750 = vlaneseq
        %v751 = vshrl.u32 %v750, 7
        %v752 = vsub.s32 0, %v751
        %v753 = vrot.slane %v748, %v752
        %755 = vmatprep.subr.mxu0 0.0
        %756 = vmatpush1.msra.mxu0 %v747
        %757 = vmatprep.subr.mxu0 0.0
        %758 = vmatpush1.msra.mxu0 %v746
        %759 = vmatprep.subr.mxu0 0.0
        %760 = vmatpush1.msra.mxu0 %v745
        %761 = vmatprep.subr.mxu0 0.0
        %762 = vmatpush1.msra.mxu0 %v744
        %763 = vmatprep.subr.mxu0 0.0
        %764 = vmatpush1.msra.mxu0 %v743
        %765 = vmatprep.subr.mxu0 0.0
        %766 = vmatpush1.msra.mxu0 %v742
        %767 = vmatprep.subr.mxu0 0.0
        %768 = vmatpush1.msra.mxu0 %v741
        %769 = vmatprep.subr.mxu0 0.0
        %770 = vmatpush1.msra.mxu0 %v740
        %771 = vmatprep.subr.mxu0 0.0
        %772 = vmatpush1.msra.mxu0 %v739
        %773 = vmatprep.subr.mxu0 0.0
        %774 = vmatpush1.msra.mxu0 %v738
        %775 = vmatprep.subr.mxu0 0.0
        %776 = vmatpush1.msra.mxu0 %v737
        %777 = vmatprep.subr.mxu0 0.0
        %778 = vmatpush1.msra.mxu0 %v736
        %779 = vmatprep.subr.mxu0 0.0
        %780 = vmatpush1.msra.mxu0 %v735
        %781 = vmatprep.subr.mxu0 0.0
        %782 = vmatpush1.msra.mxu0 %v734
        %783 = vmatprep.subr.mxu0 0.0
        %784 = vmatpush1.msra.mxu0 %v733
        %785 = vmatprep.subr.mxu0 0.0
        %786 = vmatpush1.msra.mxu0 %v732
        %787 = vmatprep.subr.mxu0 0.0
        %788 = vmatpush2.msra.mxu0 0.0
        %789 = vmatprep.subr.mxu0 0.0
        %790 = vmatpush2.msra.mxu0 0.0
        %791 = vmatprep.subr.mxu0 0.0
        %792 = vmatpush2.msra.mxu0 0.0
        %793 = vmatprep.subr.mxu0 0.0
        %794 = vmatpush2.msra.mxu0 0.0
        %795 = vmatprep.subr.mxu0 0.0
        %796 = vmatpush2.msra.mxu0 0.0
        %797 = vmatprep.subr.mxu0 0.0
        %798 = vmatpush2.msra.mxu0 0.0
        %799 = vmatprep.subr.mxu0 0.0
        %800 = vmatpush2.msra.mxu0 0.0
        %801 = vmatprep.subr.mxu0 0.0
        %802 = vmatpush2.msra.mxu0 0.0
        %803 = vmatprep.subr.mxu0 0.0
        %804 = vmatpush2.msra.mxu0 0.0
        %805 = vmatprep.subr.mxu0 0.0
        %806 = vmatpush2.msra.mxu0 0.0
        %807 = vmatprep.subr.mxu0 0.0
        %808 = vmatpush2.msra.mxu0 0.0
        %809 = vmatprep.subr.mxu0 0.0
        %810 = vmatpush2.msra.mxu0 0.0
        %811 = vmatprep.subr.mxu0 0.0
        %812 = vmatpush2.msra.mxu0 0.0
        %813 = vmatprep.subr.mxu0 0.0
        %814 = vmatpush2.msra.mxu0 0.0
        %815 = vmatprep.subr.mxu0 0.0
        %816 = vmatpush2.msra.mxu0 0.0
        %817 = vmatprep.subr.mxu0 0.0
        %818 = vmatpush2.msra.mxu0 0.0
        %819 = vmatprep.mubr.f32.mxu0 0.0
        %820 = vmatmul.mubr.f32.gmra.mxu0 %v716
        %v821 = vpop.f32.mrf.mxu0
        %v822 = vadd.f32 %v753, %v821
        %v823 = vpop.f32.mrf.mxu0
        %824 = vmatprep.mubr.f32.mxu0 0.0
        %825 = vmatmul.mubr.f32.gmra.mxu0 %v717
        %v826 = vpop.f32.mrf.mxu0
        %v827 = vadd.f32 %v753, %v826
        %v828 = vpop.f32.mrf.mxu0
        %829 = vmatprep.mubr.f32.mxu0 0.0
        %830 = vmatmul.mubr.f32.gmra.mxu0 %v718
        %v831 = vpop.f32.mrf.mxu0
        %v832 = vadd.f32 %v753, %v831
        %v833 = vpop.f32.mrf.mxu0
        %834 = vmatprep.mubr.f32.mxu0 0.0
        %835 = vmatmul.mubr.f32.gmra.mxu0 %v719
        %v836 = vpop.f32.mrf.mxu0
        %v837 = vadd.f32 %v753, %v836
        %v838 = vpop.f32.mrf.mxu0
        %839 = vmatprep.mubr.f32.mxu0 0.0
        %840 = vmatmul.mubr.f32.gmra.mxu0 %v720
        %v841 = vpop.f32.mrf.mxu0
        %v842 = vadd.f32 %v753, %v841
        %v843 = vpop.f32.mrf.mxu0
        %844 = vmatprep.mubr.f32.mxu0 0.0
        %845 = vmatmul.mubr.f32.gmra.mxu0 %v721
        %v846 = vpop.f32.mrf.mxu0
        %v847 = vadd.f32 %v753, %v846
        %v848 = vpop.f32.mrf.mxu0
        %849 = vmatprep.mubr.f32.mxu0 0.0
        %850 = vmatmul.mubr.f32.gmra.mxu0 %v722
        %v851 = vpop.f32.mrf.mxu0
        %v852 = vadd.f32 %v753, %v851
        %v853 = vpop.f32.mrf.mxu0
        %854 = vmatprep.mubr.f32.mxu0 0.0
        %855 = vmatmul.mubr.f32.gmra.mxu0 %v723
        %v856 = vpop.f32.mrf.mxu0
        %v857 = vadd.f32 %v753, %v856
        %v858 = vpop.f32.mrf.mxu0
        %859 = vmatprep.mubr.f32.mxu0 0.0
        %860 = vmatmul.mubr.f32.gmra.mxu0 %v724
        %v861 = vpop.f32.mrf.mxu0
        %v862 = vadd.f32 %v753, %v861
        %v863 = vpop.f32.mrf.mxu0
        %864 = vmatprep.mubr.f32.mxu0 0.0
        %865 = vmatmul.mubr.f32.gmra.mxu0 %v725
        %v866 = vpop.f32.mrf.mxu0
        %v867 = vadd.f32 %v753, %v866
        %v868 = vpop.f32.mrf.mxu0
        %869 = vmatprep.mubr.f32.mxu0 0.0
        %870 = vmatmul.mubr.f32.gmra.mxu0 %v726
        %v871 = vpop.f32.mrf.mxu0
        %v872 = vadd.f32 %v753, %v871
        %v873 = vpop.f32.mrf.mxu0
        %874 = vmatprep.mubr.f32.mxu0 0.0
        %875 = vmatmul.mubr.f32.gmra.mxu0 %v727
        %v876 = vpop.f32.mrf.mxu0
        %v877 = vadd.f32 %v753, %v876
        %v878 = vpop.f32.mrf.mxu0
        %879 = vmatprep.mubr.f32.mxu0 0.0
        %880 = vmatmul.mubr.f32.gmra.mxu0 %v728
        %v881 = vpop.f32.mrf.mxu0
        %v882 = vadd.f32 %v753, %v881
        %v883 = vpop.f32.mrf.mxu0
        %884 = vmatprep.mubr.f32.mxu0 0.0
        %885 = vmatmul.mubr.f32.gmra.mxu0 %v729
        %v886 = vpop.f32.mrf.mxu0
        %v887 = vadd.f32 %v753, %v886
        %v888 = vpop.f32.mrf.mxu0
        %889 = vmatprep.mubr.f32.mxu0 0.0
        %890 = vmatmul.mubr.f32.gmra.mxu0 %v730
        %v891 = vpop.f32.mrf.mxu0
        %v892 = vadd.f32 %v753, %v891
        %v893 = vpop.f32.mrf.mxu0
        %894 = vmatprep.mubr.f32.mxu0 0.0
        %895 = vmatmul.mubr.f32.gmra.mxu0 %v731
        %v896 = vpop.f32.mrf.mxu0
        %v897 = vadd.f32 %v753, %v896
        %v898 = vpop.f32.mrf.mxu0
        %899 = vdwg.mxu0
        %900 = vmax.xlane.f32.xlu0 %v822
        %v901 = vpop.xlane.xlu0 %900
        %902 = vmax.xlane.f32.xlu0 %v827
        %v903 = vpop.xlane.xlu0 %902
        %904 = vmax.xlane.f32.xlu0 %v832
        %v905 = vpop.xlane.xlu0 %904
        %906 = vmax.xlane.f32.xlu0 %v837
        %v907 = vpop.xlane.xlu0 %906
        %908 = vmax.xlane.f32.xlu0 %v842
        %v909 = vpop.xlane.xlu0 %908
        %910 = vmax.xlane.f32.xlu0 %v847
        %v911 = vpop.xlane.xlu0 %910
        %912 = vmax.xlane.f32.xlu0 %v852
        %v913 = vpop.xlane.xlu0 %912
        %914 = vmax.xlane.f32.xlu0 %v857
        %v915 = vpop.xlane.xlu0 %914
        %916 = vmax.xlane.f32.xlu0 %v862
        %v917 = vpop.xlane.xlu0 %916
        %918 = vmax.xlane.f32.xlu0 %v867
        %v919 = vpop.xlane.xlu0 %918
        %920 = vmax.xlane.f32.xlu0 %v872
        %v921 = vpop.xlane.xlu0 %920
        %922 = vmax.xlane.f32.xlu0 %v877
        %v923 = vpop.xlane.xlu0 %922
        %924 = vmax.xlane.f32.xlu0 %v882
        %v925 = vpop.xlane.xlu0 %924
        %926 = vmax.xlane.f32.xlu0 %v887
        %v927 = vpop.xlane.xlu0 %926
        %928 = vmax.xlane.f32.xlu0 %v892
        %v929 = vpop.xlane.xlu0 %928
        %930 = vmax.xlane.f32.xlu0 %v897
        %v931 = vpop.xlane.xlu0 %930
        %v932 = vsub.f32 %v822, %v901
        %v933 = vsub.f32 %v827, %v903
        %v934 = vsub.f32 %v832, %v905
        %v935 = vsub.f32 %v837, %v907
        %v936 = vsub.f32 %v842, %v909
        %v937 = vsub.f32 %v847, %v911
        %v938 = vsub.f32 %v852, %v913
        %v939 = vsub.f32 %v857, %v915
        %v940 = vsub.f32 %v862, %v917
        %v941 = vsub.f32 %v867, %v919
        %v942 = vsub.f32 %v872, %v921
        %v943 = vsub.f32 %v877, %v923
        %v944 = vsub.f32 %v882, %v925
        %v945 = vsub.f32 %v887, %v927
        %v946 = vsub.f32 %v892, %v929
        %v947 = vsub.f32 %v897, %v931
        %v948 = vmul.f32 %v932, 1.442695
        %v949 = vpow.pop %v948
        %v950 = vmul.f32 %v933, 1.442695
        %v951 = vpow.pop %v950
        %v952 = vmul.f32 %v934, 1.442695
        %v953 = vpow.pop %v952
        %v954 = vmul.f32 %v935, 1.442695
        %v955 = vpow.pop %v954
        %v956 = vmul.f32 %v936, 1.442695
        %v957 = vpow.pop %v956
        %v958 = vmul.f32 %v937, 1.442695
        %v959 = vpow.pop %v958
        %v960 = vmul.f32 %v938, 1.442695
        %v961 = vpow.pop %v960
        %v962 = vmul.f32 %v939, 1.442695
        %v963 = vpow.pop %v962
        %v964 = vmul.f32 %v940, 1.442695
        %v965 = vpow.pop %v964
        %v966 = vmul.f32 %v941, 1.442695
        %v967 = vpow.pop %v966
        %v968 = vmul.f32 %v942, 1.442695
        %v969 = vpow.pop %v968
        %v970 = vmul.f32 %v943, 1.442695
        %v971 = vpow.pop %v970
        %v972 = vmul.f32 %v944, 1.442695
        %v973 = vpow.pop %v972
        %v974 = vmul.f32 %v945, 1.442695
        %v975 = vpow.pop %v974
        %v976 = vmul.f32 %v946, 1.442695
        %v977 = vpow.pop %v976
        %v978 = vmul.f32 %v947, 1.442695
        %v979 = vpow.pop %v978
        %980 = vadd.xlane.f32.xlu0 %v949
        %v981 = vpop.xlane.xlu0 %980
        %982 = vadd.xlane.f32.xlu0 %v951
        %v983 = vpop.xlane.xlu0 %982
        %984 = vadd.xlane.f32.xlu0 %v953
        %v985 = vpop.xlane.xlu0 %984
        %986 = vadd.xlane.f32.xlu0 %v955
        %v987 = vpop.xlane.xlu0 %986
        %988 = vadd.xlane.f32.xlu0 %v957
        %v989 = vpop.xlane.xlu0 %988
        %990 = vadd.xlane.f32.xlu0 %v959
        %v991 = vpop.xlane.xlu0 %990
        %992 = vadd.xlane.f32.xlu0 %v961
        %v993 = vpop.xlane.xlu0 %992
        %994 = vadd.xlane.f32.xlu0 %v963
        %v995 = vpop.xlane.xlu0 %994
        %996 = vadd.xlane.f32.xlu0 %v965
        %v997 = vpop.xlane.xlu0 %996
        %998 = vadd.xlane.f32.xlu0 %v967
        %v999 = vpop.xlane.xlu0 %998
        %1000 = vadd.xlane.f32.xlu0 %v969
        %v1001 = vpop.xlane.xlu0 %1000
        %1002 = vadd.xlane.f32.xlu0 %v971
        %v1003 = vpop.xlane.xlu0 %1002
        %1004 = vadd.xlane.f32.xlu0 %v973
        %v1005 = vpop.xlane.xlu0 %1004
        %1006 = vadd.xlane.f32.xlu0 %v975
        %v1007 = vpop.xlane.xlu0 %1006
        %1008 = vadd.xlane.f32.xlu0 %v977
        %v1009 = vpop.xlane.xlu0 %1008
        %1010 = vadd.xlane.f32.xlu0 %v979
        %v1011 = vpop.xlane.xlu0 %1010
        %v1012 = vlog2.pop %v981
        %v1013 = vmul.f32 %v1012, 0.6931472
        %v1014 = vlog2.pop %v983
        %v1015 = vmul.f32 %v1014, 0.6931472
        %v1016 = vlog2.pop %v985
        %v1017 = vmul.f32 %v1016, 0.6931472
        %v1018 = vlog2.pop %v987
        %v1019 = vmul.f32 %v1018, 0.6931472
        %v1020 = vlog2.pop %v989
        %v1021 = vmul.f32 %v1020, 0.6931472
        %v1022 = vlog2.pop %v991
        %v1023 = vmul.f32 %v1022, 0.6931472
        %v1024 = vlog2.pop %v993
        %v1025 = vmul.f32 %v1024, 0.6931472
        %v1026 = vlog2.pop %v995
        %v1027 = vmul.f32 %v1026, 0.6931472
        %v1028 = vlog2.pop %v997
        %v1029 = vmul.f32 %v1028, 0.6931472
        %v1030 = vlog2.pop %v999
        %v1031 = vmul.f32 %v1030, 0.6931472
        %v1032 = vlog2.pop %v1001
        %v1033 = vmul.f32 %v1032, 0.6931472
        %v1034 = vlog2.pop %v1003
        %v1035 = vmul.f32 %v1034, 0.6931472
        %v1036 = vlog2.pop %v1005
        %v1037 = vmul.f32 %v1036, 0.6931472
        %v1038 = vlog2.pop %v1007
        %v1039 = vmul.f32 %v1038, 0.6931472
        %v1040 = vlog2.pop %v1009
        %v1041 = vmul.f32 %v1040, 0.6931472
        %v1042 = vlog2.pop %v1011
        %v1043 = vmul.f32 %v1042, 0.6931472
        %v1044 = vsub.f32 %v932, %v1013
        %v1045 = vsub.f32 %v933, %v1015
        %v1046 = vsub.f32 %v934, %v1017
        %v1047 = vsub.f32 %v935, %v1019
        %v1048 = vsub.f32 %v936, %v1021
        %v1049 = vsub.f32 %v937, %v1023
        %v1050 = vsub.f32 %v938, %v1025
        %v1051 = vsub.f32 %v939, %v1027
        %v1052 = vsub.f32 %v940, %v1029
        %v1053 = vsub.f32 %v941, %v1031
        %v1054 = vsub.f32 %v942, %v1033
        %v1055 = vsub.f32 %v943, %v1035
        %v1056 = vsub.f32 %v944, %v1037
        %v1057 = vsub.f32 %v945, %v1039
        %v1058 = vsub.f32 %v946, %v1041
        %v1059 = vsub.f32 %v947, %v1043
        %1060 = vst [vmem:[%s233] sm:$0xff] %v1044
        %1061 = vst [vmem:[%s233 + $0x8] sm:$0xff] %v1045
        %1062 = vst [vmem:[%s233 + $0x10] sm:$0xff] %v1046
        %1063 = vst [vmem:[%s233 + $0x18] sm:$0xff] %v1047
        %1064 = vst [vmem:[%s233 + $0x20] sm:$0xff] %v1048
        %1065 = vst [vmem:[%s233 + $0x28] sm:$0xff] %v1049
        %1066 = vst [vmem:[%s233 + $0x30] sm:$0xff] %v1050
        %1067 = vst [vmem:[%s233 + $0x38] sm:$0xff] %v1051
        %1068 = vst [vmem:[%s233 + $0x40] sm:$0xff] %v1052
        %1069 = vst [vmem:[%s233 + $0x48] sm:$0xff] %v1053
        %1070 = vst [vmem:[%s233 + $0x50] sm:$0xff] %v1054
        %1071 = vst [vmem:[%s233 + $0x58] sm:$0xff] %v1055
        %1072 = vst [vmem:[%s233 + $0x60] sm:$0xff] %v1056
        %1073 = vst [vmem:[%s233 + $0x68] sm:$0xff] %v1057
        %1074 = vst [vmem:[%s233 + $0x70] sm:$0xff] %v1058
        %1075 = vst [vmem:[%s233 + $0x78] sm:$0xff] %v1059
        %s1076 = sand.u32 %s138, 1
        %s1077 = scalar_lea.sflag [#allocation4], %s1076
        %s1078 = sand.u32 %s138, 1
        %s1079 = smul.addr %s1078, 128
        %s1080 = scalar_lea.vmem [#allocation5], %s1079
        // Predicated region
        $region45: #{tpu_custom_call.1} parent=39 // pred_check
          %p1081 = pneg %p148
        $region46: #{tpu_custom_call.1} parent=39 // pred_check_branch
          %1083 = sbr.rel (%p1081) target = $region48
        $region47: #{tpu_custom_call.1} parent=39 // pred_region
          %s1084 = smul.u32 16, %s20
          %s1086 = ssub.s32 2048, 2048
          %1087 = vsyncadd %s1077, %s1086
          %s1088 = smul.addr %s1084, 128
          %s1089 = scalar_lea.hbm %s5, %s1088
          %s1090 = sshll.u32 %s1080, 4
          %s1091 = int_to_ptr.vmem [resolvable:$true] %s1090
          %1096 = dma.vmem_to_hbm [thread:$0]  %s1091, 2048, %s1089, %s1077, 128, 128, 8
        $region48: #{tpu_custom_call.1} parent=39 // pred_fallthru
          _
      $region40: #{tpu_custom_call.1} parent=5 // pred_fallthru
        _
      %p1097 = scmp.le.s32.totalorder 2, %s15
      // Predicated region
      $region49: #{tpu_custom_call.1} parent=5 // pred_check
        %p1098 = pneg %p1097
      $region50: #{tpu_custom_call.1} parent=5 // pred_check_branch
        %1100 = sbr.rel (%p1098) target = $region52
      $region51: #{tpu_custom_call.1} parent=5 // pred_region
        %s1101 = ssub.s32 %s15, 2
        // Predicated region
        $region53: #{tpu_custom_call.1} parent=51 // pred_check
          %p1102 = pneg %p154
        $region54: #{tpu_custom_call.1} parent=51 // pred_check_branch
          %1104 = sbr.rel (%p1102) target = $region56
        $region55: #{tpu_custom_call.1} parent=51 // pred_region
          %s1105 = sand.u32 %s139, 1
          %s1106 = scalar_lea.sflag [#allocation4], %s1105
          %s1107 = sand.u32 %s139, 1
          %s1108 = smul.addr %s1107, 128
          %s1109 = scalar_lea.vmem [#allocation5], %s1108
          %1110 = dma.done %s1106, 2048
        $region56: #{tpu_custom_call.1} parent=51 // pred_fallthru
          _
      $region52: #{tpu_custom_call.1} parent=5 // pred_fallthru
        _
    $region6: #{tpu_custom_call.1} parent=1 // loop_footer
      %s19 = sadd.s32 1, %s15
    $region7: #{tpu_custom_call.1} parent=1 // loop_footer_branch
      %14 = sbr.rel target = $region3
    $region8: #{tpu_custom_call.1} parent=1 // loop_exit
      _
    %1111 = vsyncpa [#allocation3], 1
    %s1112 = scalar_lea.sflag [#allocation3], 1
    %1113 = vsyncpa %s1112, 1
    %1114 = vsyncpa [#allocation4], 1
    %s1115 = scalar_lea.sflag [#allocation4], 1
    %1116 = vsyncpa %s1115, 1

</llo_original>
